<compile_context>
chip_gen: v5e
topology: v5e:2x2
jax: 0.10.0
libtpu: 0.0.40
codegen_flags: <defaults>
</compile_context>

<pallas_src>
from functools import partial

import jax
import jax.numpy as jnp
from jax.experimental import pallas as pl
from jax.experimental.pallas import tpu as pltpu

BN_EPS = 1e-5


def _round_up(x, m):
    return (x + m - 1) // m * m


def _pick_vmem_limit():
    """Generation-aware scoped-VMEM limit with headroom for double-buffering."""
    cap = 64 << 20
    try:
        info = pltpu.get_tpu_info()
        cap = int(getattr(info, "vmem_capacity_bytes", cap) or cap)
    except Exception:
        pass
    # <= ~48 MiB per TC on v7x (64 MiB physical); up to ~96 MiB on v5e/v6e (128 MiB).
    return int(min(cap * 3 // 4, 112 << 20))


VMEM_LIMIT = _pick_vmem_limit()


# ---------------------------------------------------------------------------
# Pass 1: batch-global BN statistics over h0 = x @ W1 (no bias needed: BN in
# train mode cancels the preceding linear bias, and variance is shift-invariant).
# Zero-padded batch rows contribute exactly 0 to both accumulators, so no row
# mask is required.
# ---------------------------------------------------------------------------
def _stats_kernel(x_ref, w1_ref, sum_ref, sumsq_ref):
    @pl.when(pl.program_id(0) == 0)
    def _():
        sum_ref[...] = jnp.zeros_like(sum_ref)
        sumsq_ref[...] = jnp.zeros_like(sumsq_ref)

    h0 = jnp.dot(x_ref[...], w1_ref[...], preferred_element_type=jnp.float32)
    sum_ref[...] += jnp.sum(h0, axis=0, keepdims=True)
    sumsq_ref[...] += jnp.sum(h0 * h0, axis=0, keepdims=True)


# ---------------------------------------------------------------------------
# Pass 2: fused Linear1 -> BN(scale/shift) -> ReLU -> Linear2 -> ReLU -> Linear3
# ---------------------------------------------------------------------------
def _fnn_main_kernel(x_ref, w1_ref, scale_ref, shift_ref,
                     w2_ref, b2_ref, w3_ref, b3_ref, o_ref):
    h = jnp.dot(x_ref[...], w1_ref[...], preferred_element_type=jnp.float32)
    # BatchNorm (incl. b1, gamma, beta) folded into per-feature scale/shift.
    h = jnp.maximum(h * scale_ref[...] + shift_ref[...], 0.0)
    y = jnp.maximum(
        jnp.dot(h.astype(w2_ref.dtype), w2_ref[...],
                preferred_element_type=jnp.float32) + b2_ref[...],
        0.0)
    out = jnp.dot(y.astype(w3_ref.dtype), w3_ref[...],
                  preferred_element_type=jnp.float32) + b3_ref[...]
    o_ref[...] = out.astype(o_ref.dtype)


def prepare_params(w1, b1, gamma, beta, w2, b2, w3, b3):
    """Pad hidden/out feature dims to multiples of 128, cast weights to bf16.

    Done ONCE outside the jitted forward so no per-call padding traffic.
    Note: b1 is accepted for API fidelity but cancels exactly under
    train-mode BatchNorm (it only affects the running-stat buffers, which are
    not updated here), so it is not forwarded to the kernels.
    """
    del b1  # cancelled by train-mode BN in the forward math
    f32, bf16 = jnp.float32, jnp.bfloat16
    f, h_dim = w1.shape
    out_dim = w3.shape[1]
    hp = _round_up(h_dim, 128)
    op = _round_up(out_dim, 128)

    w1p = jnp.zeros((f, hp), f32).at[:, :h_dim].set(w1).astype(bf16)
    gp = jnp.zeros((1, hp), f32).at[:, :h_dim].set(gamma)   # pad gamma = 0
    bp = jnp.zeros((1, hp), f32).at[:, :h_dim].set(beta)
    w2p = jnp.zeros((hp, op), f32).at[:h_dim, :out_dim].set(w2).astype(bf16)
    b2p = jnp.zeros((1, op), f32).at[:, :out_dim].set(b2)
    w3p = jnp.zeros((op, op), f32).at[:out_dim, :out_dim].set(w3).astype(bf16)
    b3p = jnp.zeros((1, op), f32).at[:, :out_dim].set(b3)
    return (w1p, gp, bp, w2p, b2p, w3p, b3p), out_dim


@partial(jax.jit, static_argnames=("out_dim", "block_n"))
def fnn_forward(x, w1p, gamma_p, beta_p, w2p, b2p, w3p, b3p, *,
                out_dim, block_n=1024):
    n, f = x.shape
    hp = w1p.shape[1]
    op = w3p.shape[1]
    f32, bf16 = jnp.float32, jnp.bfloat16

    # Batch padding bounded to <8 rows per tile; >=2 tiles when possible so
    # the "parallel" Pass-2 grid can shard across v7x's two TensorCores.
    n_pad8 = _round_up(n, 8)
    num_tiles = -(-n_pad8 // block_n)
    if n_pad8 >= 16:
        num_tiles = max(num_tiles, 2)
    bn = _round_up(-(-n_pad8 // num_tiles), 8)
    n_pad = bn * num_tiles

    # bf16 x stream; feature dim left unpadded (block dim == full array dim).
    xp = jnp.zeros((n_pad, f), bf16).at[:n, :].set(x.astype(bf16))

    # ---- Pass 1: accumulate batch-global BN statistics -------------------
    s, ss = pl.pallas_call(
        _stats_kernel,
        out_shape=(jax.ShapeDtypeStruct((1, hp), f32),
                   jax.ShapeDtypeStruct((1, hp), f32)),
        grid=(num_tiles,),
        in_specs=[
            pl.BlockSpec((bn, f), lambda i: (i, 0)),    # x tile (bf16)
            pl.BlockSpec((f, hp), lambda i: (0, 0)),    # W1 (resident, bf16)
        ],
        out_specs=(pl.BlockSpec((1, hp), lambda i: (0, 0)),   # sum accumulator
                   pl.BlockSpec((1, hp), lambda i: (0, 0))),  # sumsq accumulator
        compiler_params=pltpu.CompilerParams(
            dimension_semantics=("arbitrary",),
            vmem_limit_bytes=VMEM_LIMIT),
    )(xp, w1p)

    # ---- Finalize BN: fold mean/var/gamma/beta (+ cancelled b1) ----------
    mean0 = s / n
    var = jnp.maximum(ss / n - mean0 * mean0, 0.0)   # biased variance (train)
    scale = gamma_p * jax.lax.rsqrt(var + BN_EPS)
    shift = beta_p - mean0 * scale

    # ---- Pass 2: fused MLP + relu + final Linear, tiled over the batch ----
    out_p = pl.pallas_call(
        _fnn_main_kernel,
        out_shape=jax.ShapeDtypeStruct((n_pad, op), f32),
        grid=(num_tiles,),
        in_specs=[
            pl.BlockSpec((bn, f), lambda i: (i, 0)),    # x tile (bf16)
            pl.BlockSpec((f, hp), lambda i: (0, 0)),    # W1 (bf16)
            pl.BlockSpec((1, hp), lambda i: (0, 0)),    # BN scale (f32)
            pl.BlockSpec((1, hp), lambda i: (0, 0)),    # BN shift (f32)
            pl.BlockSpec((hp, op), lambda i: (0, 0)),   # W2 (bf16)
            pl.BlockSpec((1, op), lambda i: (0, 0)),    # b2 (f32)
            pl.BlockSpec((op, op), lambda i: (0, 0)),   # W3 (bf16)
            pl.BlockSpec((1, op), lambda i: (0, 0)),    # b3 (f32)
        ],
        out_specs=pl.BlockSpec((bn, op), lambda i: (i, 0)),
        compiler_params=pltpu.CompilerParams(
            dimension_semantics=("parallel",),          # shards over v7x's 2 TCs
            vmem_limit_bytes=VMEM_LIMIT),
    )(xp, w1p, scale, shift, w2p, b2p, w3p, b3p)

    return out_p[:n, :out_dim]


def _linear_init(key, fan_in, fan_out):
    """PyTorch nn.Linear default init: U(-1/sqrt(fan_in), 1/sqrt(fan_in))."""
    kw, kb = jax.random.split(key)
    bound = 1.0 / jnp.sqrt(fan_in)
    w = jax.random.uniform(kw, (fan_in, fan_out), jnp.float32, -bound, bound)
    b = jax.random.uniform(kb, (1, fan_out), jnp.float32, -bound, bound)
    return w, b


if __name__ == "__main__":
    # Small shapes consistent with the module (layer_num = 2).
    N, IN_F, HIDDEN, OUT_F = 8, 16, 32, 32

    root = jax.random.PRNGKey(0)
    kx, k1, k2, k3 = jax.random.split(root, 4)

    x = jax.random.normal(kx, (N, IN_F), jnp.float32)

    w1, b1 = _linear_init(k1, IN_F, HIDDEN)       # MLP linears[0]
    gamma = jnp.ones((1, HIDDEN), jnp.float32)    # BatchNorm1d weight init
    beta = jnp.zeros((1, HIDDEN), jnp.float32)    # BatchNorm1d bias init
    w2, b2 = _linear_init(k2, HIDDEN, OUT_F)      # MLP linears[1]
    w3, b3 = _linear_init(k3, OUT_F, OUT_F)       # FNN linear2

    params, out_dim = prepare_params(w1, b1, gamma, beta, w2, b2, w3, b3)
    out = fnn_forward(x, *params, out_dim=out_dim)
    jax.block_until_ready(out)

    # Pure-JAX f32 reference (PyTorch train-mode BatchNorm1d semantics).
    h_ref = x @ w1 + b1
    m = h_ref.mean(0, keepdims=True)
    v = ((h_ref - m) ** 2).mean(0, keepdims=True)      # biased variance
    h_ref = (h_ref - m) / jnp.sqrt(v + BN_EPS) * gamma + beta
    h_ref = jnp.maximum(h_ref, 0.0)
    y_ref = h_ref @ w2 + b2
    ref = jnp.maximum(y_ref, 0.0) @ w3 + b3

    assert out.shape == (N, OUT_F), f"bad output shape {out.shape}"
    # bf16 streamed activations/weights vs f32 reference -> looser tolerance.
    assert jnp.allclose(out, ref, atol=5e-2, rtol=5e-2), (
        f"mismatch vs reference, max abs err {jnp.max(jnp.abs(out - ref))}")

    print("KERNEL_OK")
</pallas_src>

<mosaic_0001>
module attributes {stable_mosaic.version = 11 : i64} {
  func.func @_stats_kernel(%arg0: i32, %arg1: memref<8x16xbf16, #tpu.memory_space<vmem>>, %arg2: memref<16x128xbf16, #tpu.memory_space<vmem>>, %arg3: memref<1x128xf32, #tpu.memory_space<vmem>>, %arg4: memref<1x128xf32, #tpu.memory_space<vmem>>) attributes {dimension_semantics = [#tpu.dimension_semantics<arbitrary>], iteration_bounds = array<i64: 1>, scalar_prefetch = 0 : i64, scratch_operands = 0 : i64, tpu.core_type = #tpu.core_type<tc>, window_params = [{transform_indices = @transform_0, window_bounds = array<i64: 8, 16>}, {pipeline_mode = #tpu.pipeline_mode<synchronous>, transform_indices = @transform_1, window_bounds = array<i64: 16, 128>}, {pipeline_mode = #tpu.pipeline_mode<synchronous>, transform_indices = @transform_2, window_bounds = array<i64: 1, 128>}, {pipeline_mode = #tpu.pipeline_mode<synchronous>, transform_indices = @transform_3, window_bounds = array<i64: 1, 128>}]} {
    %c0_i32 = arith.constant 0 : i32
    %0 = arith.cmpi eq, %arg0, %c0_i32 : i32
    %1 = arith.extui %0 : i1 to i32
    %c0_i32_0 = arith.constant 0 : i32
    %2 = arith.cmpi ne, %1, %c0_i32_0 : i32
    scf.if %2 {
      %cst_14 = arith.constant 0.000000e+00 : f32
      %17 = vector.broadcast %cst_14 : f32 to vector<1x128xf32>
      %c0_15 = arith.constant 0 : index
      %c0_16 = arith.constant 0 : index
      %18 = vector.load %arg3[%c0_15, %c0_16] : memref<1x128xf32, #tpu.memory_space<vmem>>, vector<1x128xf32>
      tpu.vector_store %arg3[%c0_15, %c0_16], %17 {strides = array<i32>} : memref<1x128xf32, #tpu.memory_space<vmem>>, vector<1x128xf32>,
      %cst_17 = arith.constant 0.000000e+00 : f32
      %19 = vector.broadcast %cst_17 : f32 to vector<1x128xf32>
      %c0_18 = arith.constant 0 : index
      %c0_19 = arith.constant 0 : index
      %20 = vector.load %arg4[%c0_18, %c0_19] : memref<1x128xf32, #tpu.memory_space<vmem>>, vector<1x128xf32>
      tpu.vector_store %arg4[%c0_18, %c0_19], %19 {strides = array<i32>} : memref<1x128xf32, #tpu.memory_space<vmem>>, vector<1x128xf32>,
    } else {
    }
    %c0 = arith.constant 0 : index
    %c0_1 = arith.constant 0 : index
    %3 = vector.load %arg1[%c0, %c0_1] : memref<8x16xbf16, #tpu.memory_space<vmem>>, vector<8x16xbf16>
    %c0_2 = arith.constant 0 : index
    %c0_3 = arith.constant 0 : index
    %4 = vector.load %arg2[%c0_2, %c0_3] : memref<16x128xbf16, #tpu.memory_space<vmem>>, vector<16x128xbf16>
    %cst = arith.constant dense<0.000000e+00> : vector<8x128xf32>
    %5 = tpu.matmul %3, %4, %cst {dimension_numbers = #tpu.dot_dimension_numbers<[1], [0], [0], [1], [0, 0, 1, 1], [], []>} : vector<8x16xbf16>, vector<16x128xbf16>, vector<8x128xf32> -> vector<8x128xf32>
    %c0_4 = arith.constant 0 : index
    %c0_5 = arith.constant 0 : index
    %6 = vector.load %arg3[%c0_4, %c0_5] : memref<1x128xf32, #tpu.memory_space<vmem>>, vector<1x128xf32>
    %cst_6 = arith.constant dense<0.000000e+00> : vector<128xf32>
    %7 = vector.multi_reduction <add>, %5, %cst_6 [0] : vector<8x128xf32> to vector<128xf32>
    %8 = vector.shape_cast %7 : vector<128xf32> to vector<1x128xf32>
    %9 = arith.addf %6, %8 : vector<1x128xf32>
    %c0_7 = arith.constant 0 : index
    %c0_8 = arith.constant 0 : index
    %10 = vector.load %arg3[%c0_7, %c0_8] : memref<1x128xf32, #tpu.memory_space<vmem>>, vector<1x128xf32>
    tpu.vector_store %arg3[%c0_7, %c0_8], %9 {strides = array<i32>} : memref<1x128xf32, #tpu.memory_space<vmem>>, vector<1x128xf32>,
    %c0_9 = arith.constant 0 : index
    %c0_10 = arith.constant 0 : index
    %11 = vector.load %arg4[%c0_9, %c0_10] : memref<1x128xf32, #tpu.memory_space<vmem>>, vector<1x128xf32>
    %12 = arith.mulf %5, %5 : vector<8x128xf32>
    %cst_11 = arith.constant dense<0.000000e+00> : vector<128xf32>
    %13 = vector.multi_reduction <add>, %12, %cst_11 [0] : vector<8x128xf32> to vector<128xf32>
    %14 = vector.shape_cast %13 : vector<128xf32> to vector<1x128xf32>
    %15 = arith.addf %11, %14 : vector<1x128xf32>
    %c0_12 = arith.constant 0 : index
    %c0_13 = arith.constant 0 : index
    %16 = vector.load %arg4[%c0_12, %c0_13] : memref<1x128xf32, #tpu.memory_space<vmem>>, vector<1x128xf32>
    tpu.vector_store %arg4[%c0_12, %c0_13], %15 {strides = array<i32>} : memref<1x128xf32, #tpu.memory_space<vmem>>, vector<1x128xf32>,
    return
  }
  func.func @transform_0(%arg0: i32) -> (i32, i32) {
    %c0_i32 = arith.constant 0 : i32
    %c0_i32_0 = arith.constant 0 : i32
    return %arg0, %c0_i32 : i32, i32
  }
  func.func @transform_1(%arg0: i32) -> (i32, i32) {
    %c0_i32 = arith.constant 0 : i32
    %c0_i32_0 = arith.constant 0 : i32
    %c0_i32_1 = arith.constant 0 : i32
    return %c0_i32, %c0_i32_0 : i32, i32
  }
  func.func @transform_2(%arg0: i32) -> (i32, i32) {
    %c0_i32 = arith.constant 0 : i32
    %c0_i32_0 = arith.constant 0 : i32
    %c0_i32_1 = arith.constant 0 : i32
    return %c0_i32, %c0_i32_0 : i32, i32
  }
  func.func @transform_3(%arg0: i32) -> (i32, i32) {
    %c0_i32 = arith.constant 0 : i32
    %c0_i32_0 = arith.constant 0 : i32
    %c0_i32_1 = arith.constant 0 : i32
    return %c0_i32, %c0_i32_0 : i32, i32
  }
}

module attributes {stable_mosaic.version = 11 : i64} {
  func.func @_fnn_main_kernel(%arg0: i32, %arg1: memref<8x16xbf16, #tpu.memory_space<vmem>>, %arg2: memref<16x128xbf16, #tpu.memory_space<vmem>>, %arg3: memref<1x128xf32, #tpu.memory_space<vmem>>, %arg4: memref<1x128xf32, #tpu.memory_space<vmem>>, %arg5: memref<128x128xbf16, #tpu.memory_space<vmem>>, %arg6: memref<1x128xf32, #tpu.memory_space<vmem>>, %arg7: memref<128x128xbf16, #tpu.memory_space<vmem>>, %arg8: memref<1x128xf32, #tpu.memory_space<vmem>>, %arg9: memref<8x128xf32, #tpu.memory_space<vmem>>) attributes {dimension_semantics = [#tpu.dimension_semantics<parallel>], iteration_bounds = array<i64: 1>, scalar_prefetch = 0 : i64, scratch_operands = 0 : i64, tpu.core_type = #tpu.core_type<tc>, window_params = [{transform_indices = @transform_0, window_bounds = array<i64: 8, 16>}, {pipeline_mode = #tpu.pipeline_mode<synchronous>, transform_indices = @transform_1, window_bounds = array<i64: 16, 128>}, {pipeline_mode = #tpu.pipeline_mode<synchronous>, transform_indices = @transform_2, window_bounds = array<i64: 1, 128>}, {pipeline_mode = #tpu.pipeline_mode<synchronous>, transform_indices = @transform_3, window_bounds = array<i64: 1, 128>}, {pipeline_mode = #tpu.pipeline_mode<synchronous>, transform_indices = @transform_4, window_bounds = array<i64: 128, 128>}, {pipeline_mode = #tpu.pipeline_mode<synchronous>, transform_indices = @transform_5, window_bounds = array<i64: 1, 128>}, {pipeline_mode = #tpu.pipeline_mode<synchronous>, transform_indices = @transform_6, window_bounds = array<i64: 128, 128>}, {pipeline_mode = #tpu.pipeline_mode<synchronous>, transform_indices = @transform_7, window_bounds = array<i64: 1, 128>}, {transform_indices = @transform_8, window_bounds = array<i64: 8, 128>}]} {
    %c0 = arith.constant 0 : index
    %c0_0 = arith.constant 0 : index
    %0 = vector.load %arg1[%c0, %c0_0] : memref<8x16xbf16, #tpu.memory_space<vmem>>, vector<8x16xbf16>
    %c0_1 = arith.constant 0 : index
    %c0_2 = arith.constant 0 : index
    %1 = vector.load %arg2[%c0_1, %c0_2] : memref<16x128xbf16, #tpu.memory_space<vmem>>, vector<16x128xbf16>
    %cst = arith.constant dense<0.000000e+00> : vector<8x128xf32>
    %2 = tpu.matmul %0, %1, %cst {dimension_numbers = #tpu.dot_dimension_numbers<[1], [0], [0], [1], [0, 0, 1, 1], [], []>} : vector<8x16xbf16>, vector<16x128xbf16>, vector<8x128xf32> -> vector<8x128xf32>
    %c0_3 = arith.constant 0 : index
    %c0_4 = arith.constant 0 : index
    %3 = vector.load %arg3[%c0_3, %c0_4] : memref<1x128xf32, #tpu.memory_space<vmem>>, vector<1x128xf32>
    %4 = vector.broadcast %3 : vector<1x128xf32> to vector<8x128xf32>
    %5 = arith.mulf %2, %4 : vector<8x128xf32>
    %c0_5 = arith.constant 0 : index
    %c0_6 = arith.constant 0 : index
    %6 = vector.load %arg4[%c0_5, %c0_6] : memref<1x128xf32, #tpu.memory_space<vmem>>, vector<1x128xf32>
    %7 = vector.broadcast %6 : vector<1x128xf32> to vector<8x128xf32>
    %8 = arith.addf %5, %7 : vector<8x128xf32>
    %cst_7 = arith.constant 0.000000e+00 : f32
    %9 = vector.broadcast %cst_7 : f32 to vector<8x128xf32>
    %10 = arith.maximumf %8, %9 : vector<8x128xf32>
    %11 = arith.truncf %10 : vector<8x128xf32> to vector<8x128xbf16>
    %c0_8 = arith.constant 0 : index
    %c0_9 = arith.constant 0 : index
    %12 = vector.load %arg5[%c0_8, %c0_9] : memref<128x128xbf16, #tpu.memory_space<vmem>>, vector<128x128xbf16>
    %cst_10 = arith.constant dense<0.000000e+00> : vector<8x128xf32>
    %13 = tpu.matmul %11, %12, %cst_10 {dimension_numbers = #tpu.dot_dimension_numbers<[1], [0], [0], [1], [0, 0, 1, 1], [], []>} : vector<8x128xbf16>, vector<128x128xbf16>, vector<8x128xf32> -> vector<8x128xf32>
    %c0_11 = arith.constant 0 : index
    %c0_12 = arith.constant 0 : index
    %14 = vector.load %arg6[%c0_11, %c0_12] : memref<1x128xf32, #tpu.memory_space<vmem>>, vector<1x128xf32>
    %15 = vector.broadcast %14 : vector<1x128xf32> to vector<8x128xf32>
    %16 = arith.addf %13, %15 : vector<8x128xf32>
    %cst_13 = arith.constant 0.000000e+00 : f32
    %17 = vector.broadcast %cst_13 : f32 to vector<8x128xf32>
    %18 = arith.maximumf %16, %17 : vector<8x128xf32>
    %19 = arith.truncf %18 : vector<8x128xf32> to vector<8x128xbf16>
    %c0_14 = arith.constant 0 : index
    %c0_15 = arith.constant 0 : index
    %20 = vector.load %arg7[%c0_14, %c0_15] : memref<128x128xbf16, #tpu.memory_space<vmem>>, vector<128x128xbf16>
    %cst_16 = arith.constant dense<0.000000e+00> : vector<8x128xf32>
    %21 = tpu.matmul %19, %20, %cst_16 {dimension_numbers = #tpu.dot_dimension_numbers<[1], [0], [0], [1], [0, 0, 1, 1], [], []>} : vector<8x128xbf16>, vector<128x128xbf16>, vector<8x128xf32> -> vector<8x128xf32>
    %c0_17 = arith.constant 0 : index
    %c0_18 = arith.constant 0 : index
    %22 = vector.load %arg8[%c0_17, %c0_18] : memref<1x128xf32, #tpu.memory_space<vmem>>, vector<1x128xf32>
    %23 = vector.broadcast %22 : vector<1x128xf32> to vector<8x128xf32>
    %24 = arith.addf %21, %23 : vector<8x128xf32>
    %c0_19 = arith.constant 0 : index
    %c0_20 = arith.constant 0 : index
    %25 = vector.load %arg9[%c0_19, %c0_20] : memref<8x128xf32, #tpu.memory_space<vmem>>, vector<8x128xf32>
    tpu.vector_store %arg9[%c0_19, %c0_20], %24 {strides = array<i32>} : memref<8x128xf32, #tpu.memory_space<vmem>>, vector<8x128xf32>,
    return
  }
  func.func @transform_0(%arg0: i32) -> (i32, i32) {
    %c0_i32 = arith.constant 0 : i32
    %c0_i32_0 = arith.constant 0 : i32
    return %arg0, %c0_i32 : i32, i32
  }
  func.func @transform_1(%arg0: i32) -> (i32, i32) {
    %c0_i32 = arith.constant 0 : i32
    %c0_i32_0 = arith.constant 0 : i32
    %c0_i32_1 = arith.constant 0 : i32
    return %c0_i32, %c0_i32_0 : i32, i32
  }
  func.func @transform_2(%arg0: i32) -> (i32, i32) {
    %c0_i32 = arith.constant 0 : i32
    %c0_i32_0 = arith.constant 0 : i32
    %c0_i32_1 = arith.constant 0 : i32
    return %c0_i32, %c0_i32_0 : i32, i32
  }
  func.func @transform_3(%arg0: i32) -> (i32, i32) {
    %c0_i32 = arith.constant 0 : i32
    %c0_i32_0 = arith.constant 0 : i32
    %c0_i32_1 = arith.constant 0 : i32
    return %c0_i32, %c0_i32_0 : i32, i32
  }
  func.func @transform_4(%arg0: i32) -> (i32, i32) {
    %c0_i32 = arith.constant 0 : i32
    %c0_i32_0 = arith.constant 0 : i32
    %c0_i32_1 = arith.constant 0 : i32
    return %c0_i32, %c0_i32_0 : i32, i32
  }
  func.func @transform_5(%arg0: i32) -> (i32, i32) {
    %c0_i32 = arith.constant 0 : i32
    %c0_i32_0 = arith.constant 0 : i32
    %c0_i32_1 = arith.constant 0 : i32
    return %c0_i32, %c0_i32_0 : i32, i32
  }
  func.func @transform_6(%arg0: i32) -> (i32, i32) {
    %c0_i32 = arith.constant 0 : i32
    %c0_i32_0 = arith.constant 0 : i32
    %c0_i32_1 = arith.constant 0 : i32
    return %c0_i32, %c0_i32_0 : i32, i32
  }
  func.func @transform_7(%arg0: i32) -> (i32, i32) {
    %c0_i32 = arith.constant 0 : i32
    %c0_i32_0 = arith.constant 0 : i32
    %c0_i32_1 = arith.constant 0 : i32
    return %c0_i32, %c0_i32_0 : i32, i32
  }
  func.func @transform_8(%arg0: i32) -> (i32, i32) {
    %c0_i32 = arith.constant 0 : i32
    %c0_i32_0 = arith.constant 0 : i32
    return %arg0, %c0_i32 : i32, i32
  }
}

</mosaic_0001>

<llo_original>
// kernel: fnn_forward.2
$region0: #{fnn_forward.2}
  #allocation0 [shape = 'u32[]', space=smem, size = 0x4, offset = 0x4, fixed_abs, tag = 'smem constant byte address 0x4 - core index']
  #allocation1 [shape = 'u32[72,128]{1,0:T(1,128)}', space=vmem, size = 0x9000, scoped, tag = 'internal scratch']
  %s0 = inlined_call_operand.vmem [shape: bf16[8,16], index: 0, kind: input, shape index: {}]
  %s1 = inlined_call_operand.vmem [shape: bf16[16,128], index: 1, kind: input, shape index: {}]
  %s2 = inlined_call_operand.vmem [shape: f32[1,128], index: 2, kind: output, shape index: {0}]
  %s3 = inlined_call_operand.vmem [shape: f32[1,128], index: 3, kind: output, shape index: {1}]
  %4 = xla_tuple %s2, %s3
  %s5 = sld [smem:[#allocation0]]
  $region30: #{fnn_forward.2} parent=0
    _
  %s7 = ssub.s32 1, %s5
  %s8 = scalar_select 0, %s7, %s5
  // Predicated region
  $region2: #{fnn_forward.2} parent=0 // pred_check
    _
  $region3: #{fnn_forward.2} parent=0 // pred_check_branch
    %10 = sbr.rel (0) target = $region5
  $region4: #{fnn_forward.2} parent=0 // pred_region
    _
  $region5: #{fnn_forward.2} parent=0 // pred_fallthru
    _
  // Predicated region
  $region6: #{fnn_forward.2} parent=0 // pred_check
    _
  $region7: #{fnn_forward.2} parent=0 // pred_check_branch
    %12 = sbr.rel (0) target = $region9
  $region8: #{fnn_forward.2} parent=0 // pred_region
    _
  $region9: #{fnn_forward.2} parent=0 // pred_fallthru
    _
  %p14 = scmp.eq.s32.totalorder 0, 0
  // Predicated region
  $region10: #{fnn_forward.2} parent=0 // pred_check
    %p15 = pneg %p14
  $region11: #{fnn_forward.2} parent=0 // pred_check_branch
    %17 = sbr.rel (%p15) target = $region13
  $region12: #{fnn_forward.2} parent=0 // pred_region
    %18 = vst [vmem:[%s2] sm:$0x1] 0.0
    %19 = vst [vmem:[%s3] sm:$0x1] 0.0
  $region13: #{fnn_forward.2} parent=0 // pred_fallthru
    _
  %v20 = vld [vmem:[%s0] sm:$0xf]
  %v21 = vld [vmem:[%s1] sm:$0xf]
  %v22 = vld [vmem:[%s1 + $0x4] sm:$0xf]
  %v25 = vunpack.c.l.b16 %v21
  %v26 = vunpack.c.l.b16 %v22
  %v27 = vpack.c.b16 %v26, %v25
  %vm29 = vcmask 130048
  %v31 = vsel %vm29, %v20, 0
  %33 = vmatpush.bf16.msra.mxu0 0
  %34 = vmatpush.bf16.msra.mxu0 0
  %35 = vmatpush.bf16.msra.mxu0 0
  %36 = vmatpush.bf16.msra.mxu0 0
  %37 = vmatpush.bf16.msra.mxu0 0
  %38 = vmatpush.bf16.msra.mxu0 0
  %39 = vmatpush.bf16.msra.mxu0 0
  %40 = vmatpush.bf16.msra.mxu0 %v27
  %41 = vmatmul.bf16.gmra.mxu0 %v31
  %v42 = vpop.f32.mrf.mxu0
  %v43 = vadd.f32 0.0, %v42
  %v44 = vpop.f32.mrf.mxu0
  %45 = vdwg.mxu0
  %v46 = vld [vmem:[%s2] sm:$0x1]
  %v47 = vrot.slane %v43, 4
  %v48 = vadd.f32 %v43, %v47
  %v49 = vrot.slane %v48, 2
  %v50 = vadd.f32 %v48, %v49
  %v51 = vrot.slane %v50, 1
  %v52 = vadd.f32 %v50, %v51
  %v53 = vadd.f32 %v46, %v52
  %54 = vst [vmem:[%s2] sm:$0x1] %v53
  %v55 = vld [vmem:[%s3] sm:$0x1]
  %v56 = vmul.f32 %v43, %v43
  %v57 = vrot.slane %v56, 4
  %v58 = vadd.f32 %v56, %v57
  %v59 = vrot.slane %v58, 2
  %v60 = vadd.f32 %v58, %v59
  %v61 = vrot.slane %v60, 1
  %v62 = vadd.f32 %v60, %v61
  %v63 = vadd.f32 %v55, %v62
  %64 = vst [vmem:[%s3] sm:$0x1] %v63
  // Predicated region
  $region14: #{fnn_forward.2} parent=0 // pred_check
    _
  $region15: #{fnn_forward.2} parent=0 // pred_check_branch
    %66 = sbr.rel (0) target = $region17
  $region16: #{fnn_forward.2} parent=0 // pred_region
    _
  $region17: #{fnn_forward.2} parent=0 // pred_fallthru
    _
  // Predicated region
  $region18: #{fnn_forward.2} parent=0 // pred_check
    _
  $region19: #{fnn_forward.2} parent=0 // pred_check_branch
    %68 = sbr.rel (0) target = $region21
  $region20: #{fnn_forward.2} parent=0 // pred_region
    _
  $region21: #{fnn_forward.2} parent=0 // pred_fallthru
    _
  // Predicated region
  $region22: #{fnn_forward.2} parent=0 // pred_check
    _
  $region23: #{fnn_forward.2} parent=0 // pred_check_branch
    %70 = sbr.rel (0) target = $region25
  $region24: #{fnn_forward.2} parent=0 // pred_region
    _
  $region25: #{fnn_forward.2} parent=0 // pred_fallthru
    _
  // Predicated region
  $region26: #{fnn_forward.2} parent=0 // pred_check
    _
  $region27: #{fnn_forward.2} parent=0 // pred_check_branch
    %72 = sbr.rel (0) target = $region29
  $region28: #{fnn_forward.2} parent=0 // pred_region
    _
  $region29: #{fnn_forward.2} parent=0 // pred_fallthru
    _

// kernel: fnn_forward.3
$region0: #{fnn_forward.3}
  #allocation0 [shape = 'u32[]', space=smem, size = 0x4, offset = 0x4, fixed_abs, tag = 'smem constant byte address 0x4 - core index']
  #allocation1 [shape = 'u32[72,128]{1,0:T(1,128)}', space=vmem, size = 0x9000, scoped, tag = 'internal scratch']
  %s0 = inlined_call_operand.vmem [shape: bf16[8,16], index: 0, kind: input, shape index: {}]
  %s1 = inlined_call_operand.vmem [shape: bf16[16,128], index: 1, kind: input, shape index: {}]
  %s2 = inlined_call_operand.vmem [shape: f32[1,128], index: 2, kind: input, shape index: {}]
  %s3 = inlined_call_operand.vmem [shape: f32[1,128], index: 3, kind: input, shape index: {}]
  %s4 = inlined_call_operand.hbm [shape: bf16[128,128], index: 4, kind: input, shape index: {}]
  %s5 = inlined_call_operand.vmem [shape: f32[1,128], index: 5, kind: input, shape index: {}]
  %s6 = inlined_call_operand.hbm [shape: bf16[128,128], index: 6, kind: input, shape index: {}]
  %s7 = inlined_call_operand.vmem [shape: f32[1,128], index: 7, kind: input, shape index: {}]
  %s8 = inlined_call_operand.hbm [shape: f32[8,128], index: 8, kind: output, shape index: {}]
  %s9 = sld [smem:[#allocation0]]
  $region50: #{fnn_forward.3} parent=0
    _
  %s11 = ssub.s32 1, %s9
  %s12 = scalar_select 0, %s11, %s9
  $region1: #{fnn_forward.3} parent=0
    #allocation2 [shape = 'u8[32768]{0}', space=vmem, size = 0x8000, scoped, tag = 'input window, operand 4, single buffered']
    #allocation3 [shape = 's32[1]{0}', space=sflag, size = 0x4, scoped, tag = 'scoped memory for fnn_forward.3']
    #allocation4 [shape = 's32[1]{0}', space=sflag, size = 0x4, scoped, tag = 'scoped memory for fnn_forward.3']
    #allocation5 [shape = 'u8[32768]{0}', space=vmem, size = 0x8000, scoped, tag = 'input window, operand 6, single buffered']
    #allocation6 [shape = 's32[1]{0}', space=sflag, size = 0x4, scoped, tag = 'scoped memory for fnn_forward.3']
    #allocation7 [shape = 'u8[4096]{0}', space=vmem, size = 0x1000, scoped, tag = 'output window, operand 0, single buffered']
    %13 = vsyncpa [#allocation3], 0
    %14 = vsyncpa [#allocation6], 0
    %15 = vsyncpa [#allocation4], 0
    // Predicated region
    $region2: #{fnn_forward.3} parent=1 // pred_check
      _
    $region3: #{fnn_forward.3} parent=1 // pred_check_branch
      %17 = sbr.rel (0) target = $region5
    $region4: #{fnn_forward.3} parent=1 // pred_region
      _
    $region5: #{fnn_forward.3} parent=1 // pred_fallthru
      _
    // Predicated region
    $region6: #{fnn_forward.3} parent=1 // pred_check
      _
    $region7: #{fnn_forward.3} parent=1 // pred_check_branch
      %19 = sbr.rel (0) target = $region9
    $region8: #{fnn_forward.3} parent=1 // pred_region
      _
    $region9: #{fnn_forward.3} parent=1 // pred_fallthru
      _
    // Predicated region
    $region10: #{fnn_forward.3} parent=1 // pred_check
      _
    $region11: #{fnn_forward.3} parent=1 // pred_check_branch
      %21 = sbr.rel (0) target = $region13
    $region12: #{fnn_forward.3} parent=1 // pred_region
      _
    $region13: #{fnn_forward.3} parent=1 // pred_fallthru
      _
    // Predicated region
    $region14: #{fnn_forward.3} parent=1 // pred_check
      _
    $region15: #{fnn_forward.3} parent=1 // pred_check_branch
      %23 = sbr.rel (0) target = $region17
    $region16: #{fnn_forward.3} parent=1 // pred_region
      _
    $region17: #{fnn_forward.3} parent=1 // pred_fallthru
      _
    // Predicated region
    $region18: #{fnn_forward.3} parent=1 // pred_check
      _
    $region19: #{fnn_forward.3} parent=1 // pred_check_branch
      %25 = sbr.rel (0) target = $region21
    $region20: #{fnn_forward.3} parent=1 // pred_region
      %27 = vsyncadd [#allocation3], 0
      %s28 = sshll.u32 %s4, 4
      %s29 = int_to_ptr.hbm [resolvable:$true] %s28
      %s30 = sshll.u32 [#allocation2], 4
      %s31 = int_to_ptr.vmem [resolvable:$true] %s30
      %36 = dma.hbm_to_vmem [thread:$0]  %s29, 1024, %s31, [#allocation3], 64, 64, 4
    $region21: #{fnn_forward.3} parent=1 // pred_fallthru
      _
    // Predicated region
    $region22: #{fnn_forward.3} parent=1 // pred_check
      _
    $region23: #{fnn_forward.3} parent=1 // pred_check_branch
      %38 = sbr.rel (0) target = $region25
    $region24: #{fnn_forward.3} parent=1 // pred_region
      _
    $region25: #{fnn_forward.3} parent=1 // pred_fallthru
      _
    // Predicated region
    $region26: #{fnn_forward.3} parent=1 // pred_check
      _
    $region27: #{fnn_forward.3} parent=1 // pred_check_branch
      %40 = sbr.rel (0) target = $region29
    $region28: #{fnn_forward.3} parent=1 // pred_region
      %42 = vsyncadd [#allocation6], 0
      %s43 = sshll.u32 %s6, 4
      %s44 = int_to_ptr.hbm [resolvable:$true] %s43
      %s45 = sshll.u32 [#allocation5], 4
      %s46 = int_to_ptr.vmem [resolvable:$true] %s45
      %51 = dma.hbm_to_vmem [thread:$0]  %s44, 1024, %s46, [#allocation6], 64, 64, 4
    $region29: #{fnn_forward.3} parent=1 // pred_fallthru
      _
    // Predicated region
    $region30: #{fnn_forward.3} parent=1 // pred_check
      _
    $region31: #{fnn_forward.3} parent=1 // pred_check_branch
      %53 = sbr.rel (0) target = $region33
    $region32: #{fnn_forward.3} parent=1 // pred_region
      _
    $region33: #{fnn_forward.3} parent=1 // pred_fallthru
      _
    // Predicated region
    $region34: #{fnn_forward.3} parent=1 // pred_check
      _
    $region35: #{fnn_forward.3} parent=1 // pred_check_branch
      %55 = sbr.rel (0) target = $region37
    $region36: #{fnn_forward.3} parent=1 // pred_region
      %57 = dma.done [#allocation3], 1024
    $region37: #{fnn_forward.3} parent=1 // pred_fallthru
      _
    // Predicated region
    $region38: #{fnn_forward.3} parent=1 // pred_check
      _
    $region39: #{fnn_forward.3} parent=1 // pred_check_branch
      %59 = sbr.rel (0) target = $region41
    $region40: #{fnn_forward.3} parent=1 // pred_region
      %61 = dma.done [#allocation6], 1024
    $region41: #{fnn_forward.3} parent=1 // pred_fallthru
      _
    %v63 = vld [vmem:[%s0] sm:$0xf]
    %v64 = vld [vmem:[%s1] sm:$0xf]
    %v65 = vld [vmem:[%s1 + $0x4] sm:$0xf]
    %v68 = vunpack.c.l.b16 %v64
    %v69 = vunpack.c.l.b16 %v65
    %v70 = vpack.c.b16 %v69, %v68
    %vm72 = vcmask 130048
    %v74 = vsel %vm72, %v63, 0
    %76 = vmatpush.bf16.msra.mxu0 0
    %77 = vmatpush.bf16.msra.mxu0 0
    %78 = vmatpush.bf16.msra.mxu0 0
    %79 = vmatpush.bf16.msra.mxu0 0
    %80 = vmatpush.bf16.msra.mxu0 0
    %81 = vmatpush.bf16.msra.mxu0 0
    %82 = vmatpush.bf16.msra.mxu0 0
    %83 = vmatpush.bf16.msra.mxu0 %v70
    %84 = vmatmul.bf16.gmra.mxu0 %v74
    %v85 = vpop.f32.mrf.mxu0
    %v86 = vadd.f32 0.0, %v85
    %v87 = vpop.f32.mrf.mxu0
    %88 = vdwg.mxu0
    %v89 = vld [vmem:[%s2] sm:$0x1]
    %v91 = vperm.slane %v89, 0
    %v93 = vmul.f32 %v86, %v91
    %v94 = vld [vmem:[%s3] sm:$0x1]
    %v96 = vperm.slane %v94, 0
    %v98 = vadd.f32 %v93, %v96
    %v99 = vmax.f32 %v98, 0.0
    %v100 = vpack.c.bf16 %v99, %v99
    %v101 = vld [vmem:[#allocation2] sm:$0xf]
    %v102 = vld [vmem:[#allocation2 + $0x4] sm:$0xf]
    %v103 = vld [vmem:[#allocation2 + $0x8] sm:$0xf]
    %v104 = vld [vmem:[#allocation2 + $0xc] sm:$0xf]
    %v105 = vld [vmem:[#allocation2 + $0x10] sm:$0xf]
    %v106 = vld [vmem:[#allocation2 + $0x14] sm:$0xf]
    %v107 = vld [vmem:[#allocation2 + $0x18] sm:$0xf]
    %v108 = vld [vmem:[#allocation2 + $0x1c] sm:$0xf]
    %v109 = vld [vmem:[#allocation2 + $0x20] sm:$0xf]
    %v110 = vld [vmem:[#allocation2 + $0x24] sm:$0xf]
    %v111 = vld [vmem:[#allocation2 + $0x28] sm:$0xf]
    %v112 = vld [vmem:[#allocation2 + $0x2c] sm:$0xf]
    %v113 = vld [vmem:[#allocation2 + $0x30] sm:$0xf]
    %v114 = vld [vmem:[#allocation2 + $0x34] sm:$0xf]
    %v115 = vld [vmem:[#allocation2 + $0x38] sm:$0xf]
    %v116 = vld [vmem:[#allocation2 + $0x3c] sm:$0xf]
    %v117 = vld [vmem:[%s5] sm:$0x1]
    %v119 = vperm.slane %v117, 0
    %v137 = vunpack.c.l.b16 %v101
    %v138 = vunpack.c.l.b16 %v102
    %v139 = vunpack.c.l.b16 %v103
    %v140 = vunpack.c.l.b16 %v104
    %v141 = vunpack.c.l.b16 %v105
    %v142 = vunpack.c.l.b16 %v106
    %v143 = vunpack.c.l.b16 %v107
    %v144 = vunpack.c.l.b16 %v108
    %v145 = vunpack.c.l.b16 %v109
    %v146 = vunpack.c.l.b16 %v110
    %v147 = vunpack.c.l.b16 %v111
    %v148 = vunpack.c.l.b16 %v112
    %v149 = vunpack.c.l.b16 %v113
    %v150 = vunpack.c.l.b16 %v114
    %v151 = vunpack.c.l.b16 %v115
    %v152 = vunpack.c.l.b16 %v116
    %v153 = vpack.c.b16 %v138, %v137
    %v154 = vpack.c.b16 %v140, %v139
    %v155 = vpack.c.b16 %v142, %v141
    %v156 = vpack.c.b16 %v144, %v143
    %v157 = vpack.c.b16 %v146, %v145
    %v158 = vpack.c.b16 %v148, %v147
    %v159 = vpack.c.b16 %v150, %v149
    %v160 = vpack.c.b16 %v152, %v151
    %169 = vmatpush.bf16.msra.mxu0 %v160
    %170 = vmatpush.bf16.msra.mxu0 %v159
    %171 = vmatpush.bf16.msra.mxu0 %v158
    %172 = vmatpush.bf16.msra.mxu0 %v157
    %173 = vmatpush.bf16.msra.mxu0 %v156
    %174 = vmatpush.bf16.msra.mxu0 %v155
    %175 = vmatpush.bf16.msra.mxu0 %v154
    %176 = vmatpush.bf16.msra.mxu0 %v153
    %177 = vmatmul.bf16.gmra.mxu0 %v100
    %v178 = vpop.f32.mrf.mxu0
    %v179 = vadd.f32 %v119, %v178
    %v180 = vpop.f32.mrf.mxu0
    %181 = vdwg.mxu0
    %v182 = vmax.f32 %v179, 0.0
    %v183 = vpack.c.bf16 %v182, %v182
    %v184 = vld [vmem:[#allocation5] sm:$0xf]
    %v185 = vld [vmem:[#allocation5 + $0x4] sm:$0xf]
    %v186 = vld [vmem:[#allocation5 + $0x8] sm:$0xf]
    %v187 = vld [vmem:[#allocation5 + $0xc] sm:$0xf]
    %v188 = vld [vmem:[#allocation5 + $0x10] sm:$0xf]
    %v189 = vld [vmem:[#allocation5 + $0x14] sm:$0xf]
    %v190 = vld [vmem:[#allocation5 + $0x18] sm:$0xf]
    %v191 = vld [vmem:[#allocation5 + $0x1c] sm:$0xf]
    %v192 = vld [vmem:[#allocation5 + $0x20] sm:$0xf]
    %v193 = vld [vmem:[#allocation5 + $0x24] sm:$0xf]
    %v194 = vld [vmem:[#allocation5 + $0x28] sm:$0xf]
    %v195 = vld [vmem:[#allocation5 + $0x2c] sm:$0xf]
    %v196 = vld [vmem:[#allocation5 + $0x30] sm:$0xf]
    %v197 = vld [vmem:[#allocation5 + $0x34] sm:$0xf]
    %v198 = vld [vmem:[#allocation5 + $0x38] sm:$0xf]
    %v199 = vld [vmem:[#allocation5 + $0x3c] sm:$0xf]
    %v200 = vld [vmem:[%s7] sm:$0x1]
    %v202 = vperm.slane %v200, 0
    %v220 = vunpack.c.l.b16 %v184
    %v221 = vunpack.c.l.b16 %v185
    %v222 = vunpack.c.l.b16 %v186
    %v223 = vunpack.c.l.b16 %v187
    %v224 = vunpack.c.l.b16 %v188
    %v225 = vunpack.c.l.b16 %v189
    %v226 = vunpack.c.l.b16 %v190
    %v227 = vunpack.c.l.b16 %v191
    %v228 = vunpack.c.l.b16 %v192
    %v229 = vunpack.c.l.b16 %v193
    %v230 = vunpack.c.l.b16 %v194
    %v231 = vunpack.c.l.b16 %v195
    %v232 = vunpack.c.l.b16 %v196
    %v233 = vunpack.c.l.b16 %v197
    %v234 = vunpack.c.l.b16 %v198
    %v235 = vunpack.c.l.b16 %v199
    %v236 = vpack.c.b16 %v221, %v220
    %v237 = vpack.c.b16 %v223, %v222
    %v238 = vpack.c.b16 %v225, %v224
    %v239 = vpack.c.b16 %v227, %v226
    %v240 = vpack.c.b16 %v229, %v228
    %v241 = vpack.c.b16 %v231, %v230
    %v242 = vpack.c.b16 %v233, %v232
    %v243 = vpack.c.b16 %v235, %v234
    %252 = vmatpush.bf16.msra.mxu0 %v243
    %253 = vmatpush.bf16.msra.mxu0 %v242
    %254 = vmatpush.bf16.msra.mxu0 %v241
    %255 = vmatpush.bf16.msra.mxu0 %v240
    %256 = vmatpush.bf16.msra.mxu0 %v239
    %257 = vmatpush.bf16.msra.mxu0 %v238
    %258 = vmatpush.bf16.msra.mxu0 %v237
    %259 = vmatpush.bf16.msra.mxu0 %v236
    %260 = vmatmul.bf16.gmra.mxu0 %v183
    %v261 = vpop.f32.mrf.mxu0
    %v262 = vadd.f32 %v202, %v261
    %v263 = vpop.f32.mrf.mxu0
    %264 = vdwg.mxu0
    %265 = vst [vmem:[#allocation7] sm:$0xff] %v262
    // Predicated region
    $region42: #{fnn_forward.3} parent=1 // pred_check
      _
    $region43: #{fnn_forward.3} parent=1 // pred_check_branch
      %267 = sbr.rel (0) target = $region45
    $region44: #{fnn_forward.3} parent=1 // pred_region
      %269 = vsyncadd [#allocation4], 0
      %s271 = sshll.u32 [#allocation7], 4
      %s272 = int_to_ptr.vmem [resolvable:$true] %s271
      %s273 = sshll.u32 %s8, 4
      %s274 = int_to_ptr.hbm [resolvable:$true] %s273
      %276 = dma.vmem_to_hbm [thread:$0]  %s272, 128, %s274, [#allocation4]
    $region45: #{fnn_forward.3} parent=1 // pred_fallthru
      _
    // Predicated region
    $region46: #{fnn_forward.3} parent=1 // pred_check
      _
    $region47: #{fnn_forward.3} parent=1 // pred_check_branch
      %278 = sbr.rel (0) target = $region49
    $region48: #{fnn_forward.3} parent=1 // pred_region
      %280 = dma.done [#allocation4], 128
    $region49: #{fnn_forward.3} parent=1 // pred_fallthru
      _
    %281 = vsyncpa [#allocation3], 1
    %282 = vsyncpa [#allocation6], 1
    %283 = vsyncpa [#allocation4], 1

</llo_original>
